<compile_context>
chip_gen: v7x
topology: tpu7x:2x2x1
jax: 0.10.0
libtpu: 0.0.40
codegen_flags: <defaults>
</compile_context>

<pallas_src>
import functools

import numpy as np
import jax
import jax.numpy as jnp
from jax.experimental import pallas as pl
from jax.experimental.pallas import tpu as pltpu

LANE = 128


def _round_up(x, m):
    return ((x + m - 1) // m) * m


def _pad2d(a, rows, cols):
    r, c = a.shape
    return jnp.pad(a, ((0, rows - r), (0, cols - c)))


def _vmem_limit_bytes():
    """Generation-aware VMEM cap: ~3/4 of physical, never above 100 MiB."""
    cap = None
    try:
        cap = getattr(pltpu.get_tpu_info(), "vmem_capacity_bytes", None)
    except Exception:
        cap = None
    if not cap:
        cap = 64 * 1024 * 1024          # conservative fallback (fits v7x)
    return int(min(100 * 1024 * 1024, (cap * 3) // 4))


# ----------------------------------------------------------------------------
# Pass 1: encoder  H = relu(relu(relu(X W1 + b1) W2 + b2) W3 + b3)
# Dual output: H in f32 (for the exact Z = H + Q_star add) and in the compute
# dtype (aggregation matmul operand) so Pass 2 never casts H.
# ----------------------------------------------------------------------------
def _encoder_kernel(x_ref, w1_ref, b1_ref, w2_ref, b2_ref, w3_ref, b3_ref,
                    h32_ref, hcd_ref):
    cdt = w1_ref.dtype  # compute dtype (bf16 or f32); accumulation stays f32

    def lin_relu(x, w_ref, b_ref):
        y = jnp.dot(x.astype(cdt), w_ref[...],
                    preferred_element_type=jnp.float32)
        return jnp.maximum(y + b_ref[...], 0.0)

    h = lin_relu(x_ref[...], w1_ref, b1_ref)
    h = lin_relu(h, w2_ref, b2_ref)
    h = lin_relu(h, w3_ref, b3_ref)
    h32_ref[...] = h
    hcd_ref[...] = h.astype(hcd_ref.dtype)


# ----------------------------------------------------------------------------
# Pass 2: K-tiled top-k aggregation (get_q_star) + decoder.
# Grid = (row tile i [parallel], H-row block kb [arbitrary, reduction]).
# ----------------------------------------------------------------------------
def _agg_decode_kernel(topk_ref, qv_ref, hrow_ref, hblk_ref,
                       w4_ref, b4_ref, w5_ref, b5_ref,
                       xrec_ref, z_ref, acc_ref, *, k):
    cdt = w4_ref.dtype
    tm = z_ref.shape[0]
    tk_rows = hblk_ref.shape[0]
    kb = pl.program_id(1)

    @pl.when(kb == 0)
    def _():
        acc_ref[...] = jnp.zeros_like(acc_ref)

    # Weighted selection matrix restricted to this K block's column range:
    #   P[m, c] = qv[m, j]  if  idx[m, j] == kb*TK + c   (else 0)
    # NOTE: assumes top_k indices are unique per row (argsort-derived); the
    # literal PyTorch loop would accumulate duplicate indices.
    col = (jax.lax.broadcasted_iota(jnp.int32, (tm, tk_rows), 1)
           + kb * tk_rows)
    idx = topk_ref[...]                       # (tm, k_pad) int32, resident
    qv = qv_ref[...]                          # (tm, k_pad) compute dtype
    p = jnp.zeros((tm, tk_rows), cdt)
    for j in range(k):                        # k is small & static: unrolled
        p = jnp.where(col == idx[:, j:j + 1], qv[:, j:j + 1], p)

    # Partial Q_star for this K block, accumulated in f32 scratch.
    acc_ref[...] += jnp.dot(p, hblk_ref[...],
                            preferred_element_type=jnp.float32)

    @pl.when(kb == pl.num_programs(1) - 1)
    def _():
        z = hrow_ref[...] + acc_ref[...]      # f32 H row tile + f32 Q_star
        z_ref[...] = z

        def lin_relu(x, w_ref, b_ref):
            y = jnp.dot(x.astype(cdt), w_ref[...],
                        preferred_element_type=jnp.float32)
            return jnp.maximum(y + b_ref[...], 0.0)

        h2 = lin_relu(z, w4_ref, b4_ref)
        xrec_ref[...] = lin_relu(h2, w5_ref, b5_ref)


# ----------------------------------------------------------------------------
# Wrapper
# ----------------------------------------------------------------------------
def msne_forward(X, Q, top_k, params, *, compute_dtype=jnp.bfloat16,
                 tile_m=256, tile_k_rows=None):
    """X: (N, network_size) f32, Q: (N, N) f32, top_k: (N, k) int32.

    On v5e use compute_dtype=jnp.float32 (no bf16 VALU); bf16 is the perf
    path on v6e/v7x (bf16 MXU operands + bf16 P-build, f32 accumulation).
    """
    N, D = X.shape
    k = top_k.shape[1]
    d1 = params["W1"].shape[1]     # 256
    d2 = params["W2"].shape[1]     # 84
    hidden = params["W3"].shape[1]
    d4 = params["W4"].shape[1]     # 256

    f32 = jnp.float32
    cdt = compute_dtype

    d_pad = _round_up(D, LANE)
    d1_pad = _round_up(d1, LANE)
    d2_pad = _round_up(d2, LANE)
    h_pad = _round_up(hidden, LANE)
    d4_pad = _round_up(d4, LANE)
    k_pad = _round_up(k, LANE)     # lane-dense top_k / qv blocks

    # Row tiling (16-row granularity keeps bf16 blocks on the native tile).
    tm = _round_up(min(tile_m, _round_up(N, 16)), 16)
    n_tiles = pl.cdiv(N, tm)
    n_pad = n_tiles * tm

    # Reduction (H-row) tiling for pass 2.
    tk_rows = 512 if tile_k_rows is None else tile_k_rows
    tk_rows = _round_up(min(tk_rows, n_pad), 16)
    nk = pl.cdiv(n_pad, tk_rows)
    n_pad_k = nk * tk_rows

    # Padded operands; matmul inputs stored in the compute dtype, biases f32.
    Xp = _pad2d(X.astype(f32), n_pad, d_pad).astype(cdt)
    W1 = _pad2d(params["W1"], d_pad, d1_pad).astype(cdt)
    b1 = _pad2d(params["b1"], 1, d1_pad)
    W2 = _pad2d(params["W2"], d1_pad, d2_pad).astype(cdt)
    b2 = _pad2d(params["b2"], 1, d2_pad)
    W3 = _pad2d(params["W3"], d2_pad, h_pad).astype(cdt)
    b3 = _pad2d(params["b3"], 1, h_pad)
    W4 = _pad2d(params["W4"], h_pad, d4_pad).astype(cdt)
    b4 = _pad2d(params["b4"], 1, d4_pad)
    W5 = _pad2d(params["W5"], d4_pad, d_pad).astype(cdt)
    b5 = _pad2d(params["b5"], 1, d_pad)

    # O(N*k) index glue only: per-(row, neighbor) Q values + neighbor indices,
    # lane-padded to 128 so their DMAs are dense.  qv stored in the compute
    # dtype so the kernel never casts it.
    qv = jnp.take_along_axis(Q.astype(f32), top_k, axis=1)           # (N, k)
    qv = _pad2d(qv, n_pad, k_pad).astype(cdt)
    tk_idx = _pad2d(top_k.astype(jnp.int32), n_pad, k_pad)

    vmem_limit = _vmem_limit_bytes()
    cparams1 = pltpu.CompilerParams(
        dimension_semantics=("parallel",),            # shard row tiles on TCs
        vmem_limit_bytes=vmem_limit)
    cparams2 = pltpu.CompilerParams(
        dimension_semantics=("parallel", "arbitrary"),  # reduction axis last
        vmem_limit_bytes=vmem_limit)

    # ---- Pass 1: encoder ---------------------------------------------------
    def row1(c):
        return pl.BlockSpec((tm, c), lambda i: (i, 0))

    def pin1(r, c):
        return pl.BlockSpec((r, c), lambda i: (0, 0))

    h_f32, h_cdt = pl.pallas_call(
        _encoder_kernel,
        grid=(n_tiles,),
        in_specs=[row1(d_pad),
                  pin1(d_pad, d1_pad), pin1(1, d1_pad),
                  pin1(d1_pad, d2_pad), pin1(1, d2_pad),
                  pin1(d2_pad, h_pad), pin1(1, h_pad)],
        out_specs=(row1(h_pad), row1(h_pad)),
        out_shape=(jax.ShapeDtypeStruct((n_pad, h_pad), f32),
                   jax.ShapeDtypeStruct((n_pad, h_pad), cdt)),
        compiler_params=cparams1,
    )(Xp, W1, b1, W2, b2, W3, b3)

    # Pad the compute-dtype H rows up to a whole number of K blocks (zero rows
    # contribute nothing: their columns are never selected and they are 0).
    if n_pad_k > n_pad:
        h_cdt_k = jnp.pad(h_cdt, ((0, n_pad_k - n_pad), (0, 0)))
    else:
        h_cdt_k = h_cdt

    # ---- Pass 2: K-tiled top-k aggregation + decoder -----------------------
    def row2(c):
        return pl.BlockSpec((tm, c), lambda i, kb: (i, 0))

    def pin2(r, c):
        return pl.BlockSpec((r, c), lambda i, kb: (0, 0))

    xrec, z = pl.pallas_call(
        functools.partial(_agg_decode_kernel, k=k),
        grid=(n_tiles, nk),
        in_specs=[row2(k_pad),                                   # top_k tile
                  row2(k_pad),                                   # Q-value tile
                  row2(h_pad),                                   # f32 H row tile
                  pl.BlockSpec((tk_rows, h_pad), lambda i, kb: (kb, 0)),  # H K-block
                  pin2(h_pad, d4_pad), pin2(1, d4_pad),
                  pin2(d4_pad, d_pad), pin2(1, d_pad)],
        out_specs=(row2(d_pad), row2(h_pad)),
        out_shape=(jax.ShapeDtypeStruct((n_pad, d_pad), f32),
                   jax.ShapeDtypeStruct((n_pad, h_pad), f32)),
        scratch_shapes=[pltpu.VMEM((tm, h_pad), jnp.float32)],   # Q_star acc
        compiler_params=cparams2,
    )(tk_idx, qv, h_f32, h_cdt_k, W4, b4, W5, b5)

    return xrec[:N, :D], z[:N, :hidden]


# ----------------------------------------------------------------------------
# Pure-JAX/numpy reference (mirrors the PyTorch module; optionally emulates the
# kernel's reduced-precision matmul inputs for the bf16 configuration).
# ----------------------------------------------------------------------------
def msne_forward_ref(X, Q, top_k, params, compute_dtype=jnp.float32):
    cdt = compute_dtype
    f32 = jnp.float32
    relu = lambda v: jnp.maximum(v, 0.0)

    def lin(x, w, b):
        return jnp.dot(x.astype(cdt), w.astype(cdt),
                       preferred_element_type=f32) + b

    H = relu(lin(X, params["W1"], params["b1"]))
    H = relu(lin(H, params["W2"], params["b2"]))
    H = relu(lin(H, params["W3"], params["b3"]))

    # get_q_star: literal PyTorch double loop.
    Hn = np.asarray(H.astype(cdt).astype(f32))
    Qn = np.asarray(jnp.asarray(Q).astype(cdt).astype(f32))
    tkn = np.asarray(top_k)
    Q_star = np.zeros((Qn.shape[0], Hn.shape[1]), dtype=np.float32)
    for i in range(Qn.shape[0]):
        q = np.zeros((Hn.shape[1],), dtype=np.float32)
        for j in tkn[i]:
            q = q + Qn[i, j] * Hn[j, :]
        Q_star[i, :] = q

    Z = H + jnp.asarray(Q_star)
    Hd = relu(lin(Z, params["W4"], params["b4"]))
    X_rec = relu(lin(Hd, params["W5"], params["b5"]))
    return X_rec, Z


# ----------------------------------------------------------------------------
# Deterministic parameter init (shapes from MSNEAutoEncoder.__init__;
# weights stored (in, out), biases (1, out)).
# ----------------------------------------------------------------------------
def init_params(key, network_size, hidden_dim):
    dims = [
        ("W1", "b1", network_size, 256),
        ("W2", "b2", 256, 84),
        ("W3", "b3", 84, hidden_dim),
        ("W4", "b4", hidden_dim, 256),
        ("W5", "b5", 256, network_size),
    ]
    params = {}
    for wname, bname, d_in, d_out in dims:
        key, kw, kb = jax.random.split(key, 3)
        scale = 1.0 / np.sqrt(d_in)
        params[wname] = jax.random.normal(kw, (d_in, d_out), jnp.float32) * scale
        params[bname] = jax.random.normal(kb, (1, d_out), jnp.float32) * scale
    return params


if __name__ == "__main__":
    def run_case(case_id, N, network_size, hidden_dim, k, **fwd_kwargs):
        key = jax.random.fold_in(jax.random.PRNGKey(0), case_id)
        kx, kq, kp = jax.random.split(key, 3)
        X = jax.random.normal(kx, (N, network_size), jnp.float32)
        Q = jax.random.uniform(kq, (N, N), jnp.float32)
        top_k = jnp.argsort(-Q, axis=1)[:, :k].astype(jnp.int32)
        params = init_params(kp, network_size, hidden_dim)

        # f32 configuration: exact module semantics.
        xr, z = msne_forward(X, Q, top_k, params,
                             compute_dtype=jnp.float32, **fwd_kwargs)
        jax.block_until_ready((xr, z))
        xr_r, z_r = msne_forward_ref(X, Q, top_k, params,
                                     compute_dtype=jnp.float32)
        np.testing.assert_allclose(np.asarray(xr), np.asarray(xr_r),
                                   rtol=1e-3, atol=1e-3)
        np.testing.assert_allclose(np.asarray(z), np.asarray(z_r),
                                   rtol=1e-3, atol=1e-3)

        # bf16 MXU configuration (perf path), vs bf16-emulating reference.
        xr, z = msne_forward(X, Q, top_k, params,
                             compute_dtype=jnp.bfloat16, **fwd_kwargs)
        jax.block_until_ready((xr, z))
        xr_r, z_r = msne_forward_ref(X, Q, top_k, params,
                                     compute_dtype=jnp.bfloat16)
        np.testing.assert_allclose(np.asarray(xr), np.asarray(xr_r),
                                   rtol=5e-3, atol=5e-3)
        np.testing.assert_allclose(np.asarray(z), np.asarray(z_r),
                                   rtol=5e-3, atol=5e-3)

    # Small shape from the module spec; a multi-row-tile shape with default
    # tiling; and a forced small-tile config that exercises the K-tiled
    # reduction axis (nk > 1) and the accumulator init/finalize path.
    run_case(0, N=8, network_size=128, hidden_dim=32, k=4)
    run_case(1, N=300, network_size=200, hidden_dim=32, k=5)
    run_case(2, N=300, network_size=200, hidden_dim=32, k=5,
             tile_m=128, tile_k_rows=128)

    print("KERNEL_OK")
</pallas_src>

<mosaic_0001>
module attributes {stable_mosaic.version = 11 : i64} {
  func.func @_encoder_kernel(%arg0: i32, %arg1: memref<16x128xf32, #tpu.memory_space<vmem>>, %arg2: memref<128x256xf32, #tpu.memory_space<vmem>>, %arg3: memref<1x256xf32, #tpu.memory_space<vmem>>, %arg4: memref<256x128xf32, #tpu.memory_space<vmem>>, %arg5: memref<1x128xf32, #tpu.memory_space<vmem>>, %arg6: memref<128x128xf32, #tpu.memory_space<vmem>>, %arg7: memref<1x128xf32, #tpu.memory_space<vmem>>, %arg8: memref<16x128xf32, #tpu.memory_space<vmem>>, %arg9: memref<16x128xf32, #tpu.memory_space<vmem>>) attributes {dimension_semantics = [#tpu.dimension_semantics<parallel>], iteration_bounds = array<i64: 1>, scalar_prefetch = 0 : i64, scratch_operands = 0 : i64, tpu.core_type = #tpu.core_type<tc>, window_params = [{transform_indices = @transform_0, window_bounds = array<i64: 16, 128>}, {pipeline_mode = #tpu.pipeline_mode<synchronous>, transform_indices = @transform_1, window_bounds = array<i64: 128, 256>}, {pipeline_mode = #tpu.pipeline_mode<synchronous>, transform_indices = @transform_2, window_bounds = array<i64: 1, 256>}, {pipeline_mode = #tpu.pipeline_mode<synchronous>, transform_indices = @transform_3, window_bounds = array<i64: 256, 128>}, {pipeline_mode = #tpu.pipeline_mode<synchronous>, transform_indices = @transform_4, window_bounds = array<i64: 1, 128>}, {pipeline_mode = #tpu.pipeline_mode<synchronous>, transform_indices = @transform_5, window_bounds = array<i64: 128, 128>}, {pipeline_mode = #tpu.pipeline_mode<synchronous>, transform_indices = @transform_6, window_bounds = array<i64: 1, 128>}, {transform_indices = @transform_7, window_bounds = array<i64: 16, 128>}, {transform_indices = @transform_8, window_bounds = array<i64: 16, 128>}]} {
    %c0 = arith.constant 0 : index
    %c0_0 = arith.constant 0 : index
    %0 = vector.load %arg1[%c0, %c0_0] : memref<16x128xf32, #tpu.memory_space<vmem>>, vector<16x128xf32>
    %c0_1 = arith.constant 0 : index
    %c0_2 = arith.constant 0 : index
    %1 = vector.load %arg2[%c0_1, %c0_2] : memref<128x256xf32, #tpu.memory_space<vmem>>, vector<128x256xf32>
    %cst = arith.constant dense<0.000000e+00> : vector<16x256xf32>
    %2 = tpu.matmul %0, %1, %cst {dimension_numbers = #tpu.dot_dimension_numbers<[1], [0], [0], [1], [0, 0, 1, 1], [], []>} : vector<16x128xf32>, vector<128x256xf32>, vector<16x256xf32> -> vector<16x256xf32>
    %c0_3 = arith.constant 0 : index
    %c0_4 = arith.constant 0 : index
    %3 = vector.load %arg3[%c0_3, %c0_4] : memref<1x256xf32, #tpu.memory_space<vmem>>, vector<1x256xf32>
    %4 = vector.broadcast %3 : vector<1x256xf32> to vector<16x256xf32>
    %5 = arith.addf %2, %4 : vector<16x256xf32>
    %cst_5 = arith.constant 0.000000e+00 : f32
    %6 = vector.broadcast %cst_5 : f32 to vector<16x256xf32>
    %7 = arith.maximumf %5, %6 : vector<16x256xf32>
    %c0_6 = arith.constant 0 : index
    %c0_7 = arith.constant 0 : index
    %8 = vector.load %arg4[%c0_6, %c0_7] : memref<256x128xf32, #tpu.memory_space<vmem>>, vector<256x128xf32>
    %cst_8 = arith.constant dense<0.000000e+00> : vector<16x128xf32>
    %9 = tpu.matmul %7, %8, %cst_8 {dimension_numbers = #tpu.dot_dimension_numbers<[1], [0], [0], [1], [0, 0, 1, 1], [], []>} : vector<16x256xf32>, vector<256x128xf32>, vector<16x128xf32> -> vector<16x128xf32>
    %c0_9 = arith.constant 0 : index
    %c0_10 = arith.constant 0 : index
    %10 = vector.load %arg5[%c0_9, %c0_10] : memref<1x128xf32, #tpu.memory_space<vmem>>, vector<1x128xf32>
    %11 = vector.broadcast %10 : vector<1x128xf32> to vector<16x128xf32>
    %12 = arith.addf %9, %11 : vector<16x128xf32>
    %cst_11 = arith.constant 0.000000e+00 : f32
    %13 = vector.broadcast %cst_11 : f32 to vector<16x128xf32>
    %14 = arith.maximumf %12, %13 : vector<16x128xf32>
    %c0_12 = arith.constant 0 : index
    %c0_13 = arith.constant 0 : index
    %15 = vector.load %arg6[%c0_12, %c0_13] : memref<128x128xf32, #tpu.memory_space<vmem>>, vector<128x128xf32>
    %cst_14 = arith.constant dense<0.000000e+00> : vector<16x128xf32>
    %16 = tpu.matmul %14, %15, %cst_14 {dimension_numbers = #tpu.dot_dimension_numbers<[1], [0], [0], [1], [0, 0, 1, 1], [], []>} : vector<16x128xf32>, vector<128x128xf32>, vector<16x128xf32> -> vector<16x128xf32>
    %c0_15 = arith.constant 0 : index
    %c0_16 = arith.constant 0 : index
    %17 = vector.load %arg7[%c0_15, %c0_16] : memref<1x128xf32, #tpu.memory_space<vmem>>, vector<1x128xf32>
    %18 = vector.broadcast %17 : vector<1x128xf32> to vector<16x128xf32>
    %19 = arith.addf %16, %18 : vector<16x128xf32>
    %cst_17 = arith.constant 0.000000e+00 : f32
    %20 = vector.broadcast %cst_17 : f32 to vector<16x128xf32>
    %21 = arith.maximumf %19, %20 : vector<16x128xf32>
    %c0_18 = arith.constant 0 : index
    %c0_19 = arith.constant 0 : index
    %22 = vector.load %arg8[%c0_18, %c0_19] : memref<16x128xf32, #tpu.memory_space<vmem>>, vector<16x128xf32>
    tpu.vector_store %arg8[%c0_18, %c0_19], %21 {strides = array<i32>} : memref<16x128xf32, #tpu.memory_space<vmem>>, vector<16x128xf32>,
    %c0_20 = arith.constant 0 : index
    %c0_21 = arith.constant 0 : index
    %23 = vector.load %arg9[%c0_20, %c0_21] : memref<16x128xf32, #tpu.memory_space<vmem>>, vector<16x128xf32>
    tpu.vector_store %arg9[%c0_20, %c0_21], %21 {strides = array<i32>} : memref<16x128xf32, #tpu.memory_space<vmem>>, vector<16x128xf32>,
    return
  }
  func.func @transform_0(%arg0: i32) -> (i32, i32) {
    %c0_i32 = arith.constant 0 : i32
    %c0_i32_0 = arith.constant 0 : i32
    return %arg0, %c0_i32 : i32, i32
  }
  func.func @transform_1(%arg0: i32) -> (i32, i32) {
    %c0_i32 = arith.constant 0 : i32
    %c0_i32_0 = arith.constant 0 : i32
    %c0_i32_1 = arith.constant 0 : i32
    return %c0_i32, %c0_i32_0 : i32, i32
  }
  func.func @transform_2(%arg0: i32) -> (i32, i32) {
    %c0_i32 = arith.constant 0 : i32
    %c0_i32_0 = arith.constant 0 : i32
    %c0_i32_1 = arith.constant 0 : i32
    return %c0_i32, %c0_i32_0 : i32, i32
  }
  func.func @transform_3(%arg0: i32) -> (i32, i32) {
    %c0_i32 = arith.constant 0 : i32
    %c0_i32_0 = arith.constant 0 : i32
    %c0_i32_1 = arith.constant 0 : i32
    return %c0_i32, %c0_i32_0 : i32, i32
  }
  func.func @transform_4(%arg0: i32) -> (i32, i32) {
    %c0_i32 = arith.constant 0 : i32
    %c0_i32_0 = arith.constant 0 : i32
    %c0_i32_1 = arith.constant 0 : i32
    return %c0_i32, %c0_i32_0 : i32, i32
  }
  func.func @transform_5(%arg0: i32) -> (i32, i32) {
    %c0_i32 = arith.constant 0 : i32
    %c0_i32_0 = arith.constant 0 : i32
    %c0_i32_1 = arith.constant 0 : i32
    return %c0_i32, %c0_i32_0 : i32, i32
  }
  func.func @transform_6(%arg0: i32) -> (i32, i32) {
    %c0_i32 = arith.constant 0 : i32
    %c0_i32_0 = arith.constant 0 : i32
    %c0_i32_1 = arith.constant 0 : i32
    return %c0_i32, %c0_i32_0 : i32, i32
  }
  func.func @transform_7(%arg0: i32) -> (i32, i32) {
    %c0_i32 = arith.constant 0 : i32
    %c0_i32_0 = arith.constant 0 : i32
    return %arg0, %c0_i32 : i32, i32
  }
  func.func @transform_8(%arg0: i32) -> (i32, i32) {
    %c0_i32 = arith.constant 0 : i32
    %c0_i32_0 = arith.constant 0 : i32
    return %arg0, %c0_i32 : i32, i32
  }
}

</mosaic_0001>

<llo_original>
// kernel: tpu_custom_call.1
$region0: #{tpu_custom_call.1}
  #allocation0 [shape = 'u32[]', space=smem, size = 0x4, offset = 0x4, fixed_abs, tag = 'smem constant byte address 0x4 - core index']
  #allocation1 [shape = 'u32[144,128]{1,0:T(1,128)}', space=vmem, size = 0x12000, scoped, tag = 'internal scratch']
  %s0 = inlined_call_operand.hbm [shape: f32[16,128], index: 0, kind: input, shape index: {}]
  %s1 = inlined_call_operand.hbm [shape: f32[128,256], index: 1, kind: input, shape index: {}]
  %s2 = inlined_call_operand.vmem [shape: f32[1,256], index: 2, kind: input, shape index: {}]
  %s3 = inlined_call_operand.hbm [shape: f32[256,128], index: 3, kind: input, shape index: {}]
  %s4 = inlined_call_operand.vmem [shape: f32[1,128], index: 4, kind: input, shape index: {}]
  %s5 = inlined_call_operand.hbm [shape: f32[128,128], index: 5, kind: input, shape index: {}]
  %s6 = inlined_call_operand.vmem [shape: f32[1,128], index: 6, kind: input, shape index: {}]
  %s7 = inlined_call_operand.hbm [shape: f32[16,128], index: 7, kind: output, shape index: {0}]
  %s8 = inlined_call_operand.hbm [shape: f32[16,128], index: 8, kind: output, shape index: {1}]
  %9 = xla_tuple %s7, %s8
  %s10 = sld [smem:[#allocation0]]
  $region62: #{tpu_custom_call.1} parent=0
    _
  %s12 = ssub.s32 1, %s10
  %s13 = scalar_select 0, %s12, %s10
  $region1: #{tpu_custom_call.1} parent=0
    #allocation2 [shape = 'u8[8192]{0}', space=vmem, size = 0x2000, scoped, tag = 'input window, operand 0, single buffered']
    #allocation3 [shape = 's32[1]{0}', space=sflag, size = 0x4, scoped, tag = 'scoped memory for tpu_custom_call.1']
    #allocation4 [shape = 's32[1]{0}', space=sflag, size = 0x4, scoped, tag = 'scoped memory for tpu_custom_call.1']
    #allocation5 [shape = 'u8[131072]{0}', space=vmem, size = 0x20000, scoped, tag = 'input window, operand 1, single buffered']
    #allocation6 [shape = 's32[1]{0}', space=sflag, size = 0x4, scoped, tag = 'scoped memory for tpu_custom_call.1']
    #allocation7 [shape = 'u8[131072]{0}', space=vmem, size = 0x20000, scoped, tag = 'input window, operand 3, single buffered']
    #allocation8 [shape = 'u8[65536]{0}', space=vmem, size = 0x10000, scoped, tag = 'input window, operand 5, single buffered']
    #allocation9 [shape = 's32[1]{0}', space=sflag, size = 0x4, scoped, tag = 'scoped memory for tpu_custom_call.1']
    #allocation10 [shape = 'u8[8192]{0}', space=vmem, size = 0x2000, scoped, tag = 'output window, operand 0, single buffered']
    #allocation11 [shape = 'u8[8192]{0}', space=vmem, size = 0x2000, scoped, tag = 'output window, operand 1, single buffered']
    #allocation12 [shape = 's32[1]{0}', space=sflag, size = 0x4, scoped, tag = 'scoped memory for tpu_custom_call.1']
    %14 = vsyncpa [#allocation3], 0
    %15 = vsyncpa [#allocation6], 0
    %16 = vsyncpa [#allocation9], 0
    %17 = vsyncpa [#allocation4], 0
    %18 = vsyncpa [#allocation12], 0
    // Predicated region
    $region2: #{tpu_custom_call.1} parent=1 // pred_check
      _
    $region3: #{tpu_custom_call.1} parent=1 // pred_check_branch
      %20 = sbr.rel (0) target = $region5
    $region4: #{tpu_custom_call.1} parent=1 // pred_region
      %s22 = ssub.s32 256, 256
      %23 = vsyncadd [#allocation3], %s22
      %s24 = sshll.u32 [#allocation2], 4
      %s25 = int_to_ptr.vmem [resolvable:$true] %s24
      %30 = dma.hbm_to_vmem [thread:$0]  %s0, 256, %s25, [#allocation3], 128, 128, 8
    $region5: #{tpu_custom_call.1} parent=1 // pred_fallthru
      _
    // Predicated region
    $region6: #{tpu_custom_call.1} parent=1 // pred_check
      _
    $region7: #{tpu_custom_call.1} parent=1 // pred_check_branch
      %32 = sbr.rel (0) target = $region9
    $region8: #{tpu_custom_call.1} parent=1 // pred_region
      %s34 = ssub.s32 4096, 4096
      %35 = vsyncadd [#allocation6], %s34
      %s36 = sshll.u32 [#allocation5], 4
      %s37 = int_to_ptr.vmem [resolvable:$true] %s36
      %42 = dma.hbm_to_vmem [thread:$0]  %s1, 4096, %s37, [#allocation6], 256, 256, 16
    $region9: #{tpu_custom_call.1} parent=1 // pred_fallthru
      _
    // Predicated region
    $region10: #{tpu_custom_call.1} parent=1 // pred_check
      _
    $region11: #{tpu_custom_call.1} parent=1 // pred_check_branch
      %44 = sbr.rel (0) target = $region13
    $region12: #{tpu_custom_call.1} parent=1 // pred_region
      _
    $region13: #{tpu_custom_call.1} parent=1 // pred_fallthru
      _
    // Predicated region
    $region14: #{tpu_custom_call.1} parent=1 // pred_check
      _
    $region15: #{tpu_custom_call.1} parent=1 // pred_check_branch
      %46 = sbr.rel (0) target = $region17
    $region16: #{tpu_custom_call.1} parent=1 // pred_region
      %s48 = ssub.s32 4096, 4096
      %49 = vsyncadd [#allocation6], %s48
      %s50 = sshll.u32 [#allocation7], 4
      %s51 = int_to_ptr.vmem [resolvable:$true] %s50
      %56 = dma.hbm_to_vmem [thread:$0]  %s3, 4096, %s51, [#allocation6], 128, 128, 8
    $region17: #{tpu_custom_call.1} parent=1 // pred_fallthru
      _
    // Predicated region
    $region18: #{tpu_custom_call.1} parent=1 // pred_check
      _
    $region19: #{tpu_custom_call.1} parent=1 // pred_check_branch
      %58 = sbr.rel (0) target = $region21
    $region20: #{tpu_custom_call.1} parent=1 // pred_region
      _
    $region21: #{tpu_custom_call.1} parent=1 // pred_fallthru
      _
    // Predicated region
    $region22: #{tpu_custom_call.1} parent=1 // pred_check
      _
    $region23: #{tpu_custom_call.1} parent=1 // pred_check_branch
      %60 = sbr.rel (0) target = $region25
    $region24: #{tpu_custom_call.1} parent=1 // pred_region
      %s62 = ssub.s32 2048, 2048
      %63 = vsyncadd [#allocation9], %s62
      %s64 = sshll.u32 [#allocation8], 4
      %s65 = int_to_ptr.vmem [resolvable:$true] %s64
      %70 = dma.hbm_to_vmem [thread:$0]  %s5, 2048, %s65, [#allocation9], 128, 128, 8
    $region25: #{tpu_custom_call.1} parent=1 // pred_fallthru
      _
    // Predicated region
    $region26: #{tpu_custom_call.1} parent=1 // pred_check
      _
    $region27: #{tpu_custom_call.1} parent=1 // pred_check_branch
      %72 = sbr.rel (0) target = $region29
    $region28: #{tpu_custom_call.1} parent=1 // pred_region
      _
    $region29: #{tpu_custom_call.1} parent=1 // pred_fallthru
      _
    // Predicated region
    $region30: #{tpu_custom_call.1} parent=1 // pred_check
      _
    $region31: #{tpu_custom_call.1} parent=1 // pred_check_branch
      %74 = sbr.rel (0) target = $region33
    $region32: #{tpu_custom_call.1} parent=1 // pred_region
      %75 = dma.done [#allocation3], 256
    $region33: #{tpu_custom_call.1} parent=1 // pred_fallthru
      _
    // Predicated region
    $region34: #{tpu_custom_call.1} parent=1 // pred_check
      _
    $region35: #{tpu_custom_call.1} parent=1 // pred_check_branch
      %77 = sbr.rel (0) target = $region37
    $region36: #{tpu_custom_call.1} parent=1 // pred_region
      %78 = dma.done [#allocation6], 4096
    $region37: #{tpu_custom_call.1} parent=1 // pred_fallthru
      _
    // Predicated region
    $region38: #{tpu_custom_call.1} parent=1 // pred_check
      _
    $region39: #{tpu_custom_call.1} parent=1 // pred_check_branch
      %80 = sbr.rel (0) target = $region41
    $region40: #{tpu_custom_call.1} parent=1 // pred_region
      %81 = dma.done [#allocation6], 4096
    $region41: #{tpu_custom_call.1} parent=1 // pred_fallthru
      _
    // Predicated region
    $region42: #{tpu_custom_call.1} parent=1 // pred_check
      _
    $region43: #{tpu_custom_call.1} parent=1 // pred_check_branch
      %83 = sbr.rel (0) target = $region45
    $region44: #{tpu_custom_call.1} parent=1 // pred_region
      %84 = dma.done [#allocation9], 2048
    $region45: #{tpu_custom_call.1} parent=1 // pred_fallthru
      _
    %v85 = vld [vmem:[#allocation2] sm:$0xff]
    %v86 = vld [vmem:[#allocation2 + $0x8] sm:$0xff]
    %v87 = vld [vmem:[#allocation5] sm:$0xff]
    %v88 = vld [vmem:[#allocation5 + $0x8] sm:$0xff]
    %v89 = vld [vmem:[#allocation5 + $0x10] sm:$0xff]
    %v90 = vld [vmem:[#allocation5 + $0x18] sm:$0xff]
    %v91 = vld [vmem:[#allocation5 + $0x20] sm:$0xff]
    %v92 = vld [vmem:[#allocation5 + $0x28] sm:$0xff]
    %v93 = vld [vmem:[#allocation5 + $0x30] sm:$0xff]
    %v94 = vld [vmem:[#allocation5 + $0x38] sm:$0xff]
    %v95 = vld [vmem:[#allocation5 + $0x40] sm:$0xff]
    %v96 = vld [vmem:[#allocation5 + $0x48] sm:$0xff]
    %v97 = vld [vmem:[#allocation5 + $0x50] sm:$0xff]
    %v98 = vld [vmem:[#allocation5 + $0x58] sm:$0xff]
    %v99 = vld [vmem:[#allocation5 + $0x60] sm:$0xff]
    %v100 = vld [vmem:[#allocation5 + $0x68] sm:$0xff]
    %v101 = vld [vmem:[#allocation5 + $0x70] sm:$0xff]
    %v102 = vld [vmem:[#allocation5 + $0x78] sm:$0xff]
    %v103 = vld [vmem:[#allocation5 + $0x80] sm:$0xff]
    %v104 = vld [vmem:[#allocation5 + $0x88] sm:$0xff]
    %v105 = vld [vmem:[#allocation5 + $0x90] sm:$0xff]
    %v106 = vld [vmem:[#allocation5 + $0x98] sm:$0xff]
    %v107 = vld [vmem:[#allocation5 + $0xa0] sm:$0xff]
    %v108 = vld [vmem:[#allocation5 + $0xa8] sm:$0xff]
    %v109 = vld [vmem:[#allocation5 + $0xb0] sm:$0xff]
    %v110 = vld [vmem:[#allocation5 + $0xb8] sm:$0xff]
    %v111 = vld [vmem:[#allocation5 + $0xc0] sm:$0xff]
    %v112 = vld [vmem:[#allocation5 + $0xc8] sm:$0xff]
    %v113 = vld [vmem:[#allocation5 + $0xd0] sm:$0xff]
    %v114 = vld [vmem:[#allocation5 + $0xd8] sm:$0xff]
    %v115 = vld [vmem:[#allocation5 + $0xe0] sm:$0xff]
    %v116 = vld [vmem:[#allocation5 + $0xe8] sm:$0xff]
    %v117 = vld [vmem:[#allocation5 + $0xf0] sm:$0xff]
    %v118 = vld [vmem:[#allocation5 + $0xf8] sm:$0xff]
    %v119 = vld [vmem:[%s2] sm:$0x3]
    %v121 = vlaneseq
    %v122 = vshrl.u32 %v121, 7
    %v123 = vsub.s32 0, %v122
    %v124 = vrot.slane %v119, %v123
    %v125 = vlaneseq
    %v126 = vshrl.u32 %v125, 7
    %v127 = vsub.s32 1, %v126
    %v128 = vrot.slane %v119, %v127
    %131 = vmatprep.subr.mxu0 %v88
    %132 = vmatpush1.msra.mxu0 %v87
    %133 = vmatprep.subr.mxu0 %v90
    %134 = vmatpush1.msra.mxu0 %v89
    %135 = vmatprep.subr.mxu0 %v92
    %136 = vmatpush1.msra.mxu0 %v91
    %137 = vmatprep.subr.mxu0 %v94
    %138 = vmatpush1.msra.mxu0 %v93
    %139 = vmatprep.subr.mxu0 %v96
    %140 = vmatpush1.msra.mxu0 %v95
    %141 = vmatprep.subr.mxu0 %v98
    %142 = vmatpush1.msra.mxu0 %v97
    %143 = vmatprep.subr.mxu0 %v100
    %144 = vmatpush1.msra.mxu0 %v99
    %145 = vmatprep.subr.mxu0 %v102
    %146 = vmatpush1.msra.mxu0 %v101
    %147 = vmatprep.subr.mxu0 %v104
    %148 = vmatpush1.msra.mxu0 %v103
    %149 = vmatprep.subr.mxu0 %v106
    %150 = vmatpush1.msra.mxu0 %v105
    %151 = vmatprep.subr.mxu0 %v108
    %152 = vmatpush1.msra.mxu0 %v107
    %153 = vmatprep.subr.mxu0 %v110
    %154 = vmatpush1.msra.mxu0 %v109
    %155 = vmatprep.subr.mxu0 %v112
    %156 = vmatpush1.msra.mxu0 %v111
    %157 = vmatprep.subr.mxu0 %v114
    %158 = vmatpush1.msra.mxu0 %v113
    %159 = vmatprep.subr.mxu0 %v116
    %160 = vmatpush1.msra.mxu0 %v115
    %161 = vmatprep.subr.mxu0 %v118
    %162 = vmatpush1.msra.mxu0 %v117
    %163 = vmatprep.subr.mxu0 0.0
    %164 = vmatpush1.msra.mxu0 0.0
    %165 = vmatprep.subr.mxu0 0.0
    %166 = vmatpush1.msra.mxu0 0.0
    %167 = vmatprep.subr.mxu0 0.0
    %168 = vmatpush1.msra.mxu0 0.0
    %169 = vmatprep.subr.mxu0 0.0
    %170 = vmatpush1.msra.mxu0 0.0
    %171 = vmatprep.subr.mxu0 0.0
    %172 = vmatpush1.msra.mxu0 0.0
    %173 = vmatprep.subr.mxu0 0.0
    %174 = vmatpush1.msra.mxu0 0.0
    %175 = vmatprep.subr.mxu0 0.0
    %176 = vmatpush1.msra.mxu0 0.0
    %177 = vmatprep.subr.mxu0 0.0
    %178 = vmatpush1.msra.mxu0 0.0
    %179 = vmatprep.subr.mxu0 0.0
    %180 = vmatpush1.msra.mxu0 0.0
    %181 = vmatprep.subr.mxu0 0.0
    %182 = vmatpush1.msra.mxu0 0.0
    %183 = vmatprep.subr.mxu0 0.0
    %184 = vmatpush1.msra.mxu0 0.0
    %185 = vmatprep.subr.mxu0 0.0
    %186 = vmatpush1.msra.mxu0 0.0
    %187 = vmatprep.subr.mxu0 0.0
    %188 = vmatpush1.msra.mxu0 0.0
    %189 = vmatprep.subr.mxu0 0.0
    %190 = vmatpush1.msra.mxu0 0.0
    %191 = vmatprep.subr.mxu0 0.0
    %192 = vmatpush1.msra.mxu0 0.0
    %193 = vmatprep.subr.mxu0 0.0
    %194 = vmatpush1.msra.mxu0 0.0
    %195 = vmatprep.mubr.f32.mxu0 0.0
    %196 = vmatmul.mubr.f32.gmra.mrb[0].mxu0 %v85
    %v197 = vpop.f32.mrb[0].mxu0
    %v198 = vadd.f32 %v124, %v197
    %v199 = vpop.f32.mrb[0].mxu0
    %v200 = vadd.f32 %v128, %v199
    %201 = vmatprep.mubr.f32.mxu0 0.0
    %202 = vmatmul.mubr.f32.gmra.mrb[0].mxu0 %v86
    %v203 = vpop.f32.mrb[0].mxu0
    %v204 = vadd.f32 %v124, %v203
    %v205 = vpop.f32.mrb[0].mxu0
    %v206 = vadd.f32 %v128, %v205
    %207 = vdwg.mxu0
    %v208 = vmax.f32 %v198, 0.0
    %v209 = vmax.f32 %v200, 0.0
    %v210 = vmax.f32 %v204, 0.0
    %v211 = vmax.f32 %v206, 0.0
    %v212 = vld [vmem:[#allocation7] sm:$0xff]
    %v213 = vld [vmem:[#allocation7 + $0x8] sm:$0xff]
    %v214 = vld [vmem:[#allocation7 + $0x10] sm:$0xff]
    %v215 = vld [vmem:[#allocation7 + $0x18] sm:$0xff]
    %v216 = vld [vmem:[#allocation7 + $0x20] sm:$0xff]
    %v217 = vld [vmem:[#allocation7 + $0x28] sm:$0xff]
    %v218 = vld [vmem:[#allocation7 + $0x30] sm:$0xff]
    %v219 = vld [vmem:[#allocation7 + $0x38] sm:$0xff]
    %v220 = vld [vmem:[#allocation7 + $0x40] sm:$0xff]
    %v221 = vld [vmem:[#allocation7 + $0x48] sm:$0xff]
    %v222 = vld [vmem:[#allocation7 + $0x50] sm:$0xff]
    %v223 = vld [vmem:[#allocation7 + $0x58] sm:$0xff]
    %v224 = vld [vmem:[#allocation7 + $0x60] sm:$0xff]
    %v225 = vld [vmem:[#allocation7 + $0x68] sm:$0xff]
    %v226 = vld [vmem:[#allocation7 + $0x70] sm:$0xff]
    %v227 = vld [vmem:[#allocation7 + $0x78] sm:$0xff]
    %v228 = vld [vmem:[#allocation7 + $0x80] sm:$0xff]
    %v229 = vld [vmem:[#allocation7 + $0x88] sm:$0xff]
    %v230 = vld [vmem:[#allocation7 + $0x90] sm:$0xff]
    %v231 = vld [vmem:[#allocation7 + $0x98] sm:$0xff]
    %v232 = vld [vmem:[#allocation7 + $0xa0] sm:$0xff]
    %v233 = vld [vmem:[#allocation7 + $0xa8] sm:$0xff]
    %v234 = vld [vmem:[#allocation7 + $0xb0] sm:$0xff]
    %v235 = vld [vmem:[#allocation7 + $0xb8] sm:$0xff]
    %v236 = vld [vmem:[#allocation7 + $0xc0] sm:$0xff]
    %v237 = vld [vmem:[#allocation7 + $0xc8] sm:$0xff]
    %v238 = vld [vmem:[#allocation7 + $0xd0] sm:$0xff]
    %v239 = vld [vmem:[#allocation7 + $0xd8] sm:$0xff]
    %v240 = vld [vmem:[#allocation7 + $0xe0] sm:$0xff]
    %v241 = vld [vmem:[#allocation7 + $0xe8] sm:$0xff]
    %v242 = vld [vmem:[#allocation7 + $0xf0] sm:$0xff]
    %v243 = vld [vmem:[#allocation7 + $0xf8] sm:$0xff]
    %v244 = vld [vmem:[%s4] sm:$0x1]
    %v246 = vlaneseq
    %v247 = vshrl.u32 %v246, 7
    %v248 = vsub.s32 0, %v247
    %v249 = vrot.slane %v244, %v248
    %251 = vmatprep.subr.mxu0 0.0
    %252 = vmatpush1.msra.mxu0 %v212
    %253 = vmatprep.subr.mxu0 0.0
    %254 = vmatpush1.msra.mxu0 %v213
    %255 = vmatprep.subr.mxu0 0.0
    %256 = vmatpush1.msra.mxu0 %v214
    %257 = vmatprep.subr.mxu0 0.0
    %258 = vmatpush1.msra.mxu0 %v215
    %259 = vmatprep.subr.mxu0 0.0
    %260 = vmatpush1.msra.mxu0 %v216
    %261 = vmatprep.subr.mxu0 0.0
    %262 = vmatpush1.msra.mxu0 %v217
    %263 = vmatprep.subr.mxu0 0.0
    %264 = vmatpush1.msra.mxu0 %v218
    %265 = vmatprep.subr.mxu0 0.0
    %266 = vmatpush1.msra.mxu0 %v219
    %267 = vmatprep.subr.mxu0 0.0
    %268 = vmatpush1.msra.mxu0 %v220
    %269 = vmatprep.subr.mxu0 0.0
    %270 = vmatpush1.msra.mxu0 %v221
    %271 = vmatprep.subr.mxu0 0.0
    %272 = vmatpush1.msra.mxu0 %v222
    %273 = vmatprep.subr.mxu0 0.0
    %274 = vmatpush1.msra.mxu0 %v223
    %275 = vmatprep.subr.mxu0 0.0
    %276 = vmatpush1.msra.mxu0 %v224
    %277 = vmatprep.subr.mxu0 0.0
    %278 = vmatpush1.msra.mxu0 %v225
    %279 = vmatprep.subr.mxu0 0.0
    %280 = vmatpush1.msra.mxu0 %v226
    %281 = vmatprep.subr.mxu0 0.0
    %282 = vmatpush1.msra.mxu0 %v227
    %283 = vmatprep.subr.mxu0 0.0
    %284 = vmatpush1.msra.mxu0 %v228
    %285 = vmatprep.subr.mxu0 0.0
    %286 = vmatpush1.msra.mxu0 %v229
    %287 = vmatprep.subr.mxu0 0.0
    %288 = vmatpush1.msra.mxu0 %v230
    %289 = vmatprep.subr.mxu0 0.0
    %290 = vmatpush1.msra.mxu0 %v231
    %291 = vmatprep.subr.mxu0 0.0
    %292 = vmatpush1.msra.mxu0 %v232
    %293 = vmatprep.subr.mxu0 0.0
    %294 = vmatpush1.msra.mxu0 %v233
    %295 = vmatprep.subr.mxu0 0.0
    %296 = vmatpush1.msra.mxu0 %v234
    %297 = vmatprep.subr.mxu0 0.0
    %298 = vmatpush1.msra.mxu0 %v235
    %299 = vmatprep.subr.mxu0 0.0
    %300 = vmatpush1.msra.mxu0 %v236
    %301 = vmatprep.subr.mxu0 0.0
    %302 = vmatpush1.msra.mxu0 %v237
    %303 = vmatprep.subr.mxu0 0.0
    %304 = vmatpush1.msra.mxu0 %v238
    %305 = vmatprep.subr.mxu0 0.0
    %306 = vmatpush1.msra.mxu0 %v239
    %307 = vmatprep.subr.mxu0 0.0
    %308 = vmatpush1.msra.mxu0 %v240
    %309 = vmatprep.subr.mxu0 0.0
    %310 = vmatpush1.msra.mxu0 %v241
    %311 = vmatprep.subr.mxu0 0.0
    %312 = vmatpush1.msra.mxu0 %v242
    %313 = vmatprep.subr.mxu0 0.0
    %314 = vmatpush1.msra.mxu0 %v243
    %315 = vmatprep.mubr.f32.mxu0 %v209
    %316 = vmatmul.mubr.f32.gmra.mrb[0].mxu0 %v208
    %v317 = vpop.f32.mrb[0].mxu0
    %v318 = vadd.f32 %v249, %v317
    %v319 = vpop.f32.mrb[0].mxu0
    %320 = vmatprep.mubr.f32.mxu0 %v211
    %321 = vmatmul.mubr.f32.gmra.mrb[0].mxu0 %v210
    %v322 = vpop.f32.mrb[0].mxu0
    %v323 = vadd.f32 %v249, %v322
    %v324 = vpop.f32.mrb[0].mxu0
    %325 = vdwg.mxu0
    %v326 = vmax.f32 %v318, 0.0
    %v327 = vmax.f32 %v323, 0.0
    %v328 = vld [vmem:[#allocation8] sm:$0xff]
    %v329 = vld [vmem:[#allocation8 + $0x8] sm:$0xff]
    %v330 = vld [vmem:[#allocation8 + $0x10] sm:$0xff]
    %v331 = vld [vmem:[#allocation8 + $0x18] sm:$0xff]
    %v332 = vld [vmem:[#allocation8 + $0x20] sm:$0xff]
    %v333 = vld [vmem:[#allocation8 + $0x28] sm:$0xff]
    %v334 = vld [vmem:[#allocation8 + $0x30] sm:$0xff]
    %v335 = vld [vmem:[#allocation8 + $0x38] sm:$0xff]
    %v336 = vld [vmem:[#allocation8 + $0x40] sm:$0xff]
    %v337 = vld [vmem:[#allocation8 + $0x48] sm:$0xff]
    %v338 = vld [vmem:[#allocation8 + $0x50] sm:$0xff]
    %v339 = vld [vmem:[#allocation8 + $0x58] sm:$0xff]
    %v340 = vld [vmem:[#allocation8 + $0x60] sm:$0xff]
    %v341 = vld [vmem:[#allocation8 + $0x68] sm:$0xff]
    %v342 = vld [vmem:[#allocation8 + $0x70] sm:$0xff]
    %v343 = vld [vmem:[#allocation8 + $0x78] sm:$0xff]
    %v344 = vld [vmem:[%s6] sm:$0x1]
    %v346 = vlaneseq
    %v347 = vshrl.u32 %v346, 7
    %v348 = vsub.s32 0, %v347
    %v349 = vrot.slane %v344, %v348
    %351 = vmatprep.subr.mxu0 0.0
    %352 = vmatpush1.msra.mxu0 %v328
    %353 = vmatprep.subr.mxu0 0.0
    %354 = vmatpush1.msra.mxu0 %v329
    %355 = vmatprep.subr.mxu0 0.0
    %356 = vmatpush1.msra.mxu0 %v330
    %357 = vmatprep.subr.mxu0 0.0
    %358 = vmatpush1.msra.mxu0 %v331
    %359 = vmatprep.subr.mxu0 0.0
    %360 = vmatpush1.msra.mxu0 %v332
    %361 = vmatprep.subr.mxu0 0.0
    %362 = vmatpush1.msra.mxu0 %v333
    %363 = vmatprep.subr.mxu0 0.0
    %364 = vmatpush1.msra.mxu0 %v334
    %365 = vmatprep.subr.mxu0 0.0
    %366 = vmatpush1.msra.mxu0 %v335
    %367 = vmatprep.subr.mxu0 0.0
    %368 = vmatpush1.msra.mxu0 %v336
    %369 = vmatprep.subr.mxu0 0.0
    %370 = vmatpush1.msra.mxu0 %v337
    %371 = vmatprep.subr.mxu0 0.0
    %372 = vmatpush1.msra.mxu0 %v338
    %373 = vmatprep.subr.mxu0 0.0
    %374 = vmatpush1.msra.mxu0 %v339
    %375 = vmatprep.subr.mxu0 0.0
    %376 = vmatpush1.msra.mxu0 %v340
    %377 = vmatprep.subr.mxu0 0.0
    %378 = vmatpush1.msra.mxu0 %v341
    %379 = vmatprep.subr.mxu0 0.0
    %380 = vmatpush1.msra.mxu0 %v342
    %381 = vmatprep.subr.mxu0 0.0
    %382 = vmatpush1.msra.mxu0 %v343
    %383 = vmatprep.subr.mxu0 0.0
    %384 = vmatpush1.msra.mxu0 0.0
    %385 = vmatprep.subr.mxu0 0.0
    %386 = vmatpush1.msra.mxu0 0.0
    %387 = vmatprep.subr.mxu0 0.0
    %388 = vmatpush1.msra.mxu0 0.0
    %389 = vmatprep.subr.mxu0 0.0
    %390 = vmatpush1.msra.mxu0 0.0
    %391 = vmatprep.subr.mxu0 0.0
    %392 = vmatpush1.msra.mxu0 0.0
    %393 = vmatprep.subr.mxu0 0.0
    %394 = vmatpush1.msra.mxu0 0.0
    %395 = vmatprep.subr.mxu0 0.0
    %396 = vmatpush1.msra.mxu0 0.0
    %397 = vmatprep.subr.mxu0 0.0
    %398 = vmatpush1.msra.mxu0 0.0
    %399 = vmatprep.subr.mxu0 0.0
    %400 = vmatpush1.msra.mxu0 0.0
    %401 = vmatprep.subr.mxu0 0.0
    %402 = vmatpush1.msra.mxu0 0.0
    %403 = vmatprep.subr.mxu0 0.0
    %404 = vmatpush1.msra.mxu0 0.0
    %405 = vmatprep.subr.mxu0 0.0
    %406 = vmatpush1.msra.mxu0 0.0
    %407 = vmatprep.subr.mxu0 0.0
    %408 = vmatpush1.msra.mxu0 0.0
    %409 = vmatprep.subr.mxu0 0.0
    %410 = vmatpush1.msra.mxu0 0.0
    %411 = vmatprep.subr.mxu0 0.0
    %412 = vmatpush1.msra.mxu0 0.0
    %413 = vmatprep.subr.mxu0 0.0
    %414 = vmatpush1.msra.mxu0 0.0
    %415 = vmatprep.mubr.f32.mxu0 0.0
    %416 = vmatmul.mubr.f32.gmra.mrb[0].mxu0 %v326
    %v417 = vpop.f32.mrb[0].mxu0
    %v418 = vadd.f32 %v349, %v417
    %v419 = vpop.f32.mrb[0].mxu0
    %420 = vmatprep.mubr.f32.mxu0 0.0
    %421 = vmatmul.mubr.f32.gmra.mrb[0].mxu0 %v327
    %v422 = vpop.f32.mrb[0].mxu0
    %v423 = vadd.f32 %v349, %v422
    %v424 = vpop.f32.mrb[0].mxu0
    %425 = vdwg.mxu0
    %v426 = vmax.f32 %v418, 0.0
    %v427 = vmax.f32 %v423, 0.0
    %428 = vst [vmem:[#allocation10] sm:$0xff] %v426
    %429 = vst [vmem:[#allocation10 + $0x8] sm:$0xff] %v427
    %430 = vst [vmem:[#allocation11] sm:$0xff] %v426
    %431 = vst [vmem:[#allocation11 + $0x8] sm:$0xff] %v427
    // Predicated region
    $region46: #{tpu_custom_call.1} parent=1 // pred_check
      _
    $region47: #{tpu_custom_call.1} parent=1 // pred_check_branch
      %433 = sbr.rel (0) target = $region49
    $region48: #{tpu_custom_call.1} parent=1 // pred_region
      %s435 = ssub.s32 256, 256
      %436 = vsyncadd [#allocation4], %s435
      %s437 = sshll.u32 [#allocation10], 4
      %s438 = int_to_ptr.vmem [resolvable:$true] %s437
      %443 = dma.vmem_to_hbm [thread:$0]  %s438, 256, %s7, [#allocation4], 128, 128, 8
    $region49: #{tpu_custom_call.1} parent=1 // pred_fallthru
      _
    // Predicated region
    $region50: #{tpu_custom_call.1} parent=1 // pred_check
      _
    $region51: #{tpu_custom_call.1} parent=1 // pred_check_branch
      %445 = sbr.rel (0) target = $region53
    $region52: #{tpu_custom_call.1} parent=1 // pred_region
      %s447 = ssub.s32 256, 256
      %448 = vsyncadd [#allocation12], %s447
      %s449 = sshll.u32 [#allocation11], 4
      %s450 = int_to_ptr.vmem [resolvable:$true] %s449
      %455 = dma.vmem_to_hbm [thread:$0]  %s450, 256, %s8, [#allocation12], 128, 128, 8
    $region53: #{tpu_custom_call.1} parent=1 // pred_fallthru
      _
    // Predicated region
    $region54: #{tpu_custom_call.1} parent=1 // pred_check
      _
    $region55: #{tpu_custom_call.1} parent=1 // pred_check_branch
      %457 = sbr.rel (0) target = $region57
    $region56: #{tpu_custom_call.1} parent=1 // pred_region
      %458 = dma.done [#allocation4], 256
    $region57: #{tpu_custom_call.1} parent=1 // pred_fallthru
      _
    // Predicated region
    $region58: #{tpu_custom_call.1} parent=1 // pred_check
      _
    $region59: #{tpu_custom_call.1} parent=1 // pred_check_branch
      %460 = sbr.rel (0) target = $region61
    $region60: #{tpu_custom_call.1} parent=1 // pred_region
      %461 = dma.done [#allocation12], 256
    $region61: #{tpu_custom_call.1} parent=1 // pred_fallthru
      _
    %462 = vsyncpa [#allocation3], 1
    %463 = vsyncpa [#allocation6], 1
    %464 = vsyncpa [#allocation9], 1
    %465 = vsyncpa [#allocation4], 1
    %466 = vsyncpa [#allocation12], 1

</llo_original>
